<compile_context>
chip_gen: v5e
topology: v5e:2x2
jax: 0.10.0
libtpu: 0.0.40
codegen_flags: <defaults>
</compile_context>

<pallas_src>
import math

import jax
import jax.numpy as jnp
from jax.experimental import pallas as pl
from jax.experimental.pallas import tpu as pltpu


def _ceil_to(x, m):
    return ((x + m - 1) // m) * m


def _make_hinge_kernel(*, k, C, L, R, tile_r, chunk_rows, n_chunks, use_mxu):
    """Kernel over one (tile_r, L) block; emits one f32 partial sum."""

    def kernel(out_ref, tgt_ref, psum_ref):
        base_row = pl.program_id(0) * tile_r

        if use_mxu:
            # C is a power of two here (k > 1 => C | 128).
            shift = int(C).bit_length() - 1
            sub = jax.lax.broadcasted_iota(jnp.int32, (k, L), 0)
            col = jax.lax.broadcasted_iota(jnp.int32, (k, L), 1)
            # rep_m[s, j] = 1 iff j // C == s  (constant 0/1 replication matrix)
            rep_m = jnp.where((col >> shift) == sub,
                              jnp.bfloat16(1), jnp.bfloat16(0))
            lane_mod = (jax.lax.broadcasted_iota(jnp.int32, (1, L), 1)
                        & (C - 1)).astype(jnp.float32)                 # (1, L)

        def chunk_sum(r0, rows):
            x = out_ref[pl.ds(r0, rows), :]          # (rows, L) f32
            t = tgt_ref[pl.ds(r0, rows), :]          # (rows, k) bf16 / int32
            if use_mxu:
                # t_rep[r, j] = t[r, j // C], built on the idle MXU (exact:
                # class ids <= 63 in bf16, 0/1 matrix, f32 accumulation).
                t_rep = jnp.dot(t, rep_m, preferred_element_type=jnp.float32)
                sign = jnp.where(t_rep == lane_mod,
                                 jnp.float32(1.0), jnp.float32(-1.0))
            else:
                lane = jax.lax.broadcasted_iota(jnp.int32, (rows, L), 1)
                match = lane == t[:, 0:1]
                for s in range(1, k):
                    match = match | (lane == (t[:, s:s + 1] + s * C))
                sign = jnp.where(match, jnp.float32(1.0), jnp.float32(-1.0))

            hinge = jnp.maximum(jnp.float32(1.0) - x * sign, jnp.float32(0.0))
            # Lane-first reduce, then mask rows >= R (ragged last tile reads
            # garbage rows; select-based mask kills any NaN/Inf in them).
            row_sum = jnp.sum(hinge, axis=-1, keepdims=True)           # (rows, 1)
            row_ids = (base_row + r0 +
                       jax.lax.broadcasted_iota(jnp.int32, (rows, 1), 0))
            row_sum = jnp.where(row_ids < R, row_sum, jnp.float32(0.0))
            return jnp.sum(row_sum, keepdims=True)                     # (1, 1)

        if n_chunks == 1:
            psum_ref[...] = chunk_sum(0, tile_r)
        else:
            # fori_loop bounds the live range of the per-chunk temporaries.
            def body(c, acc):
                r0 = pl.multiple_of(c * chunk_rows, chunk_rows)
                return acc + chunk_sum(r0, chunk_rows)

            psum_ref[...] = jax.lax.fori_loop(
                0, n_chunks, body, jnp.zeros((1, 1), jnp.float32))

    return kernel


def hinge_loss(outputs: jax.Array, targets: jax.Array) -> jax.Array:
    """outputs: (B, C) float, targets: (B,) int class ids -> scalar f32 loss."""
    B, C = outputs.shape
    outputs = outputs.astype(jnp.float32)
    targets = targets.astype(jnp.int32)

    LANE = 128
    # Lane-dense packing factor; gcd with B keeps the reshape an exact (free)
    # contiguous reshape -> no pad/slice copy for any B.
    k_full = LANE // C if (C < LANE and LANE % C == 0) else 1
    k = math.gcd(k_full, B) if k_full > 1 else 1
    L = k * C
    R = B // k                                   # packed rows

    # --- block / chunk sizing -------------------------------------------------
    row_out_bytes = _ceil_to(L, LANE) * 4                      # lane-padded VMEM row
    chunk_rows = max(8, ((262144 // row_out_bytes) // 8) * 8)  # ~256 KiB per chunk

    if R <= chunk_rows:
        tile_r, n_chunks = R, 1                  # single full-extent block
    else:
        row_tgt_bytes = LANE * (2 if k > 1 else 4)             # lane-padded tgt row
        # 32 MiB scoped limit: ~28 MiB budget = double-buffered pipeline
        # (2 x outputs + 2 x targets) + headroom for per-chunk temporaries.
        budget = 28 * 1024 * 1024 - 8 * chunk_rows * row_out_bytes
        cap_rows = max(chunk_rows,
                       (budget // (2 * (row_out_bytes + row_tgt_bytes)))
                       // chunk_rows * chunk_rows)
        # >= 2 tiles whenever possible so v7x megacore splits the grid axis.
        half_rows = _ceil_to(pl.cdiv(R, 2), chunk_rows)
        tile_r = min(cap_rows, half_rows)
        n_chunks = tile_r // chunk_rows
    num_tiles = pl.cdiv(R, tile_r)

    use_mxu = (k > 1) and (tile_r >= 8)
    tgt_dtype = jnp.bfloat16 if use_mxu else jnp.int32   # ids <= 63 exact in bf16

    outputs_p = outputs.reshape(R, L)                    # contiguous -> no copy
    targets_p = targets.astype(tgt_dtype).reshape(R, k)

    kernel = _make_hinge_kernel(k=k, C=C, L=L, R=R, tile_r=tile_r,
                                chunk_rows=chunk_rows, n_chunks=n_chunks,
                                use_mxu=use_mxu)

    psums = pl.pallas_call(
        kernel,
        out_shape=jax.ShapeDtypeStruct((num_tiles, 1), jnp.float32),
        grid_spec=pltpu.PrefetchScalarGridSpec(
            num_scalar_prefetch=0,
            grid=(num_tiles,),
            in_specs=[
                pl.BlockSpec((tile_r, L), lambda i: (i, 0)),
                pl.BlockSpec((tile_r, k), lambda i: (i, 0)),
            ],
            out_specs=pl.BlockSpec((1, 1), lambda i: (i, 0)),
        ),
        compiler_params=pltpu.CompilerParams(
            dimension_semantics=("parallel",),
            vmem_limit_bytes=32 * 1024 * 1024,
        ),
    )(outputs_p, targets_p)

    # Final reduce over per-tile partials; static 1/(B*C) folded at trace time.
    return jnp.sum(psums) * (1.0 / float(B * C))


def hinge_loss_ref(outputs, targets):
    # Pure-JAX reference mirroring the PyTorch forward exactly.
    C = outputs.shape[-1]
    one_hot = jax.nn.one_hot(targets, C, dtype=jnp.float32)
    return jnp.mean(jnp.maximum(1.0 - outputs * (2.0 * one_hot - 1.0), 0.0))


if __name__ == "__main__":
    key = jax.random.PRNGKey(0)

    # Small deterministic cases covering every code path:
    #  (8, 32)    tiny, packed k=4, compare-chain fallback, single tile
    #  (10, 32)   B not divisible by 128//C -> gcd packing (k=2), no copies
    #  (260, 32)  MXU t_rep path, single full-extent tile
    #  (16, 200)  k=1 / int32-targets path (C not a divisor of 128)
    #  (4104, 32) multi-tile grid + in-kernel chunk loop + ragged-tile masking
    cases = [(8, 32), (10, 32), (260, 32), (16, 200), (4104, 32)]

    for idx, (B, C) in enumerate(cases):
        k_out, k_tgt = jax.random.split(jax.random.fold_in(key, idx))
        outputs = jax.random.normal(k_out, (B, C), dtype=jnp.float32)
        targets = jax.random.randint(k_tgt, (B,), 0, C, dtype=jnp.int32)

        loss = hinge_loss(outputs, targets)
        jax.block_until_ready(loss)

        ref = hinge_loss_ref(outputs, targets)
        assert jnp.allclose(loss, ref, atol=1e-6, rtol=1e-4), (B, C, loss, ref)

    print("KERNEL_OK")
</pallas_src>

<mosaic_0001>
module attributes {stable_mosaic.version = 11 : i64} {
  func.func @kernel(%arg0: i32, %arg1: memref<2x128xf32, #tpu.memory_space<vmem>>, %arg2: memref<2x4xi32, #tpu.memory_space<vmem>>, %arg3: memref<1x1xf32, #tpu.memory_space<vmem>>) attributes {dimension_semantics = [#tpu.dimension_semantics<parallel>], iteration_bounds = array<i64: 1>, scalar_prefetch = 0 : i64, scratch_operands = 0 : i64, tpu.core_type = #tpu.core_type<tc>, window_params = [{transform_indices = @transform_0, window_bounds = array<i64: 2, 128>}, {transform_indices = @transform_1, window_bounds = array<i64: 2, 4>}, {transform_indices = @transform_2, window_bounds = array<i64: 1, 1>}]} {
    %c2_i32 = arith.constant 2 : i32
    %0 = arith.muli %arg0, %c2_i32 : i32
    %c0 = arith.constant 0 : index
    %c0_0 = arith.constant 0 : index
    %1 = vector.load %arg1[%c0, %c0_0] : memref<2x128xf32, #tpu.memory_space<vmem>>, vector<2x128xf32>
    %c0_1 = arith.constant 0 : index
    %c0_2 = arith.constant 0 : index
    %2 = vector.load %arg2[%c0_1, %c0_2] : memref<2x4xi32, #tpu.memory_space<vmem>>, vector<2x4xi32>
    %3 = tpu.iota {dimensions = array<i32: 1>} : vector<2x128xi32>
    %4 = vector.extract_strided_slice %2 {offsets = [0, 0], sizes = [2, 1], strides = [1, 1]} : vector<2x4xi32> to vector<2x1xi32>
    %5 = vector.broadcast %4 : vector<2x1xi32> to vector<2x128xi32>
    %6 = arith.cmpi eq, %3, %5 : vector<2x128xi32>
    %7 = vector.extract_strided_slice %2 {offsets = [0, 1], sizes = [2, 1], strides = [1, 1]} : vector<2x4xi32> to vector<2x1xi32>
    %c32_i32 = arith.constant 32 : i32
    %8 = vector.broadcast %c32_i32 : i32 to vector<2x1xi32>
    %9 = arith.addi %7, %8 : vector<2x1xi32>
    %10 = vector.broadcast %9 : vector<2x1xi32> to vector<2x128xi32>
    %11 = arith.cmpi eq, %3, %10 : vector<2x128xi32>
    %12 = arith.ori %6, %11 : vector<2x128xi1>
    %13 = vector.extract_strided_slice %2 {offsets = [0, 2], sizes = [2, 1], strides = [1, 1]} : vector<2x4xi32> to vector<2x1xi32>
    %c64_i32 = arith.constant 64 : i32
    %14 = vector.broadcast %c64_i32 : i32 to vector<2x1xi32>
    %15 = arith.addi %13, %14 : vector<2x1xi32>
    %16 = vector.broadcast %15 : vector<2x1xi32> to vector<2x128xi32>
    %17 = arith.cmpi eq, %3, %16 : vector<2x128xi32>
    %18 = arith.ori %12, %17 : vector<2x128xi1>
    %19 = vector.extract_strided_slice %2 {offsets = [0, 3], sizes = [2, 1], strides = [1, 1]} : vector<2x4xi32> to vector<2x1xi32>
    %c96_i32 = arith.constant 96 : i32
    %20 = vector.broadcast %c96_i32 : i32 to vector<2x1xi32>
    %21 = arith.addi %19, %20 : vector<2x1xi32>
    %22 = vector.broadcast %21 : vector<2x1xi32> to vector<2x128xi32>
    %23 = arith.cmpi eq, %3, %22 : vector<2x128xi32>
    %24 = arith.ori %18, %23 : vector<2x128xi1>
    %cst = arith.constant 1.000000e+00 : f32
    %cst_3 = arith.constant -1.000000e+00 : f32
    %25 = vector.broadcast %cst : f32 to vector<2x128xf32>
    %26 = vector.broadcast %cst_3 : f32 to vector<2x128xf32>
    %27 = arith.select %24, %25, %26 : vector<2x128xi1>, vector<2x128xf32>
    %28 = arith.mulf %1, %27 : vector<2x128xf32>
    %cst_4 = arith.constant 1.000000e+00 : f32
    %29 = vector.broadcast %cst_4 : f32 to vector<2x128xf32>
    %30 = arith.subf %29, %28 : vector<2x128xf32>
    %cst_5 = arith.constant 0.000000e+00 : f32
    %31 = vector.broadcast %cst_5 : f32 to vector<2x128xf32>
    %32 = arith.maximumf %30, %31 : vector<2x128xf32>
    %cst_6 = arith.constant dense<0.000000e+00> : vector<2xf32>
    %33 = vector.multi_reduction <add>, %32, %cst_6 [1] : vector<2x128xf32> to vector<2xf32>
    %34 = vector.shape_cast %33 : vector<2xf32> to vector<2x1xf32>
    %c0_i32 = arith.constant 0 : i32
    %35 = arith.addi %0, %c0_i32 : i32
    %36 = tpu.iota {dimensions = array<i32: 0>} : vector<2x1xi32>
    %37 = vector.broadcast %35 : i32 to vector<2x1xi32>
    %38 = arith.addi %37, %36 : vector<2x1xi32>
    %c2_i32_7 = arith.constant 2 : i32
    %39 = vector.broadcast %c2_i32_7 : i32 to vector<2x1xi32>
    %40 = arith.cmpi slt, %38, %39 : vector<2x1xi32>
    %cst_8 = arith.constant 0.000000e+00 : f32
    %41 = vector.broadcast %cst_8 : f32 to vector<2x1xf32>
    %42 = arith.select %40, %34, %41 : vector<2x1xi1>, vector<2x1xf32>
    %43 = vector.shape_cast %42 : vector<2x1xf32> to vector<1x2x1xf32>
    %cst_9 = arith.constant dense<0.000000e+00> : vector<1xf32>
    %44 = vector.multi_reduction <add>, %43, %cst_9 [1, 2] : vector<1x2x1xf32> to vector<1xf32>
    %45 = vector.shape_cast %44 : vector<1xf32> to vector<1x1x1xf32>
    %46 = vector.extract %45[0, 0, 0] : f32 from vector<1x1x1xf32>
    %47 = vector.broadcast %46 : f32 to vector<1x1xf32>
    %c0_10 = arith.constant 0 : index
    %c0_11 = arith.constant 0 : index
    %48 = vector.load %arg3[%c0_10, %c0_11] : memref<1x1xf32, #tpu.memory_space<vmem>>, vector<1x1xf32>
    tpu.vector_store %arg3[%c0_10, %c0_11], %47 {strides = array<i32>} : memref<1x1xf32, #tpu.memory_space<vmem>>, vector<1x1xf32>,
    return
  }
  func.func @transform_0(%arg0: i32) -> (i32, i32) {
    %c0_i32 = arith.constant 0 : i32
    %c0_i32_0 = arith.constant 0 : i32
    return %arg0, %c0_i32 : i32, i32
  }
  func.func @transform_1(%arg0: i32) -> (i32, i32) {
    %c0_i32 = arith.constant 0 : i32
    %c0_i32_0 = arith.constant 0 : i32
    return %arg0, %c0_i32 : i32, i32
  }
  func.func @transform_2(%arg0: i32) -> (i32, i32) {
    %c0_i32 = arith.constant 0 : i32
    %c0_i32_0 = arith.constant 0 : i32
    return %arg0, %c0_i32 : i32, i32
  }
}

</mosaic_0001>

<llo_original>
// kernel: tpu_custom_call.1
$region0: #{tpu_custom_call.1}
  #allocation0 [shape = 'u32[]', space=smem, size = 0x4, offset = 0x4, fixed_abs, tag = 'smem constant byte address 0x4 - core index']
  #allocation1 [shape = 'u32[72,128]{1,0:T(1,128)}', space=vmem, size = 0x9000, scoped, tag = 'internal scratch']
  %s0 = inlined_call_operand.hbm [shape: f32[2,128], index: 0, kind: input, shape index: {}]
  %s1 = inlined_call_operand.hbm [shape: s32[2,4], index: 1, kind: input, shape index: {}]
  %s2 = inlined_call_operand.hbm [shape: f32[1,1], index: 2, kind: output, shape index: {}]
  %s3 = sld [smem:[#allocation0]]
  $region26: #{tpu_custom_call.1} parent=0
    _
  %s5 = ssub.s32 1, %s3
  %s6 = scalar_select 0, %s5, %s3
  $region1: #{tpu_custom_call.1} parent=0
    #allocation2 [shape = 'u8[1024]{0}', space=vmem, size = 0x400, scoped, tag = 'input window, operand 0, single buffered']
    #allocation3 [shape = 's32[1]{0}', space=sflag, size = 0x4, scoped, tag = 'scoped memory for tpu_custom_call.1']
    #allocation4 [shape = 's32[1]{0}', space=sflag, size = 0x4, scoped, tag = 'scoped memory for tpu_custom_call.1']
    #allocation5 [shape = 'u8[1024]{0}', space=vmem, size = 0x400, scoped, tag = 'input window, operand 1, single buffered']
    #allocation6 [shape = 's32[1]{0}', space=sflag, size = 0x4, scoped, tag = 'scoped memory for tpu_custom_call.1']
    #allocation7 [shape = 'u8[512]{0}', space=vmem, size = 0x400, scoped, tag = 'output window, operand 0, single buffered']
    %7 = vsyncpa [#allocation3], 0
    %8 = vsyncpa [#allocation6], 0
    %9 = vsyncpa [#allocation4], 0
    // Predicated region
    $region2: #{tpu_custom_call.1} parent=1 // pred_check
      _
    $region3: #{tpu_custom_call.1} parent=1 // pred_check_branch
      %11 = sbr.rel (0) target = $region5
    $region4: #{tpu_custom_call.1} parent=1 // pred_region
      %13 = vsyncadd [#allocation3], 0
      %s15 = sshll.u32 %s0, 4
      %s16 = int_to_ptr.hbm [resolvable:$true] %s15
      %s17 = sshll.u32 [#allocation2], 4
      %s18 = int_to_ptr.vmem [resolvable:$true] %s17
      %20 = dma.hbm_to_vmem [thread:$0]  %s16, 32, %s18, [#allocation3]
    $region5: #{tpu_custom_call.1} parent=1 // pred_fallthru
      _
    // Predicated region
    $region6: #{tpu_custom_call.1} parent=1 // pred_check
      _
    $region7: #{tpu_custom_call.1} parent=1 // pred_check_branch
      %22 = sbr.rel (0) target = $region9
    $region8: #{tpu_custom_call.1} parent=1 // pred_region
      %24 = vsyncadd [#allocation6], 0
      %s26 = sshll.u32 %s1, 4
      %s27 = int_to_ptr.hbm [resolvable:$true] %s26
      %s28 = sshll.u32 [#allocation5], 4
      %s29 = int_to_ptr.vmem [resolvable:$true] %s28
      %31 = dma.hbm_to_vmem [thread:$0]  %s27, 32, %s29, [#allocation6]
    $region9: #{tpu_custom_call.1} parent=1 // pred_fallthru
      _
    // Predicated region
    $region10: #{tpu_custom_call.1} parent=1 // pred_check
      _
    $region11: #{tpu_custom_call.1} parent=1 // pred_check_branch
      %33 = sbr.rel (0) target = $region13
    $region12: #{tpu_custom_call.1} parent=1 // pred_region
      %35 = dma.done [#allocation3], 32
    $region13: #{tpu_custom_call.1} parent=1 // pred_fallthru
      _
    // Predicated region
    $region14: #{tpu_custom_call.1} parent=1 // pred_check
      _
    $region15: #{tpu_custom_call.1} parent=1 // pred_check_branch
      %37 = sbr.rel (0) target = $region17
    $region16: #{tpu_custom_call.1} parent=1 // pred_region
      %39 = dma.done [#allocation6], 32
    $region17: #{tpu_custom_call.1} parent=1 // pred_fallthru
      _
    %s40 = smul.u32 0, 2
    %v41 = vld [vmem:[#allocation2] sm:$0x3]
    %v42 = vld [vmem:[#allocation5] sm:$0x3]
    %v43 = vlaneseq
    %v44 = vand.u32 %v43, 127
    %45 = vset.pattern.permute.xlu0 0
    %46 = vperm.xlu0 %45, %v42
    %v47 = vpop.permute.xlu0 %46
    %vm48 = vcmp.eq.s32.totalorder %v44, %v47
    %v49 = vadd.s32 %v42, 32
    %50 = vset.pattern.permute.xlu0 1
    %51 = vperm.xlu0 %50, %v49
    %v52 = vpop.permute.xlu0 %51
    %vm53 = vcmp.eq.s32.totalorder %v44, %v52
    %vm54 = vmor %vm48, %vm53
    %v55 = vadd.s32 %v42, 64
    %56 = vset.pattern.permute.xlu0 2
    %57 = vperm.xlu0 %56, %v55
    %v58 = vpop.permute.xlu0 %57
    %vm59 = vcmp.eq.s32.totalorder %v44, %v58
    %vm60 = vmor %vm54, %vm59
    %v61 = vadd.s32 %v42, 96
    %62 = vset.pattern.permute.xlu0 3
    %63 = vperm.xlu0 %62, %v61
    %v64 = vpop.permute.xlu0 %63
    %vm65 = vcmp.eq.s32.totalorder %v44, %v64
    %vm66 = vmor %vm60, %vm65
    %v67 = vsel %vm66, 1.0, -1.0
    %v68 = vmul.f32 %v41, %v67
    %v69 = vsub.f32 1.0, %v68
    %v70 = vmax.f32 %v69, 0.0
    %vm71 = vcmask 1041408
    %v72 = vsel %vm71, %v70, 0.0
    %73 = vadd.xlane.f32.xlu0 %v72
    %v74 = vpop.xlane.xlu0 %73
    %v75 = vlaneseq
    %v76 = vshrl.u32 %v75, 7
    %v77 = vstv %s40
    %v78 = vadd.s32 %v77, %v76
    %vm79 = vcmp.lt.s32.totalorder %v78, 2
    %v80 = vsel %vm79, %v74, 0.0
    %vm81 = vcmask 1024
    %v82 = vsel %vm81, %v80, 0.0
    %83 = vadd.xlane.f32.xlu0 %v82
    %v84 = vpop.xlane.xlu0 %83
    %v85 = vrot.slane %v84, 4
    %v86 = vadd.f32 %v84, %v85
    %v87 = vrot.slane %v86, 2
    %v88 = vadd.f32 %v86, %v87
    %v89 = vrot.slane %v88, 1
    %v90 = vadd.f32 %v88, %v89
    %s91 = vtos %v90
    %v92 = vstv %s91
    %vm93 = vcmask 0
    %94 = vst.msk [vmem:[#allocation7] sm:$0x1] %vm93, %v92
    // Predicated region
    $region18: #{tpu_custom_call.1} parent=1 // pred_check
      _
    $region19: #{tpu_custom_call.1} parent=1 // pred_check_branch
      %96 = sbr.rel (0) target = $region21
    $region20: #{tpu_custom_call.1} parent=1 // pred_region
      %98 = vsyncadd [#allocation4], 0
      %s100 = sshll.u32 [#allocation7], 4
      %s101 = int_to_ptr.vmem [resolvable:$true] %s100
      %s102 = sshll.u32 %s2, 4
      %s103 = int_to_ptr.hbm [resolvable:$true] %s102
      %105 = dma.vmem_to_hbm [thread:$0]  %s101, 16, %s103, [#allocation4]
    $region21: #{tpu_custom_call.1} parent=1 // pred_fallthru
      _
    // Predicated region
    $region22: #{tpu_custom_call.1} parent=1 // pred_check
      _
    $region23: #{tpu_custom_call.1} parent=1 // pred_check_branch
      %107 = sbr.rel (0) target = $region25
    $region24: #{tpu_custom_call.1} parent=1 // pred_region
      %109 = dma.done [#allocation4], 16
    $region25: #{tpu_custom_call.1} parent=1 // pred_fallthru
      _
    %110 = vsyncpa [#allocation3], 1
    %111 = vsyncpa [#allocation6], 1
    %112 = vsyncpa [#allocation4], 1

</llo_original>
